<compile_context>
chip_gen: v7x
topology: tpu7x:2x2x1
jax: 0.10.0
libtpu: 0.0.40
codegen_flags: <defaults>
</compile_context>

<pallas_src>
import functools

import jax
import jax.numpy as jnp
from jax.experimental import pallas as pl
from jax.experimental.pallas import tpu as pltpu


# ----------------------------------------------------------------------------
# Pass 1: per-channel sum / sum-of-squares of Y = W @ X (stats only, no Y out).
# Grid = (B, T). Batch axis "parallel" (per-b partial stat blocks), tile axis
# "arbitrary" (stat block resident across the tiles of one batch).
# ----------------------------------------------------------------------------
def _conv_stats_kernel(x_ref, w_ref, sum_ref, sq_ref, *, valid_len, tm):
    i = pl.program_id(1)

    @pl.when(i == 0)
    def _():
        sum_ref[...] = jnp.zeros_like(sum_ref)
        sq_ref[...] = jnp.zeros_like(sq_ref)

    x = x_ref[0]                                                    # (K, tm)
    y = jnp.dot(w_ref[...], x, preferred_element_type=jnp.float32)  # (N, tm)

    # Mask lanes past the end of the pixel axis (ragged last tile: the OOB
    # input lanes are unspecified padding).
    lane = jax.lax.broadcasted_iota(jnp.int32, y.shape, 1)
    y = jnp.where(lane < (valid_len - i * tm), y, 0.0)

    sum_ref[0] += jnp.sum(y, axis=1, keepdims=True)                 # (N, 1)
    sq_ref[0] += jnp.sum(y * y, axis=1, keepdims=True)              # (N, 1)


# ----------------------------------------------------------------------------
# Pass 2: fused 1x1 conv (BN scale pre-folded into W) + BN shift + ReLU.
# Lane-dense output store; fully parallel grid.
# ----------------------------------------------------------------------------
def _conv_bn_relu_kernel(x_ref, ws_ref, shift_ref, o_ref):
    y = jnp.dot(ws_ref[...], x_ref[0],
                preferred_element_type=jnp.float32)                 # (N, tm)
    o_ref[0] = jnp.maximum(y + shift_ref[...], 0.0).astype(o_ref.dtype)


def _fourier_conv_bn_relu(f_in, w, gamma, beta, *, eps, tm):
    """f_in: (B, K, L) channels-first; w: (N, K). Returns relu(bn(w @ f_in))."""
    B, K, L = f_in.shape
    N = w.shape[0]

    # Whole pixel axis as one full-extent block when it fits; otherwise tile
    # in multiples of 128 lanes with an in-kernel mask on the ragged edge.
    tm_eff = L if L <= tm else tm
    T = pl.cdiv(L, tm_eff)

    f_in = f_in.astype(jnp.float32)
    w = w.astype(jnp.float32)

    # ---- pass 1: statistics -------------------------------------------------
    ch_sum_p, ch_sq_p = pl.pallas_call(
        functools.partial(_conv_stats_kernel, valid_len=L, tm=tm_eff),
        out_shape=(
            jax.ShapeDtypeStruct((B, N, 1), jnp.float32),
            jax.ShapeDtypeStruct((B, N, 1), jnp.float32),
        ),
        grid_spec=pltpu.PrefetchScalarGridSpec(
            num_scalar_prefetch=0,
            grid=(B, T),
            in_specs=[
                pl.BlockSpec((1, K, tm_eff), lambda b, i: (b, 0, i)),
                pl.BlockSpec((N, K), lambda b, i: (0, 0)),
            ],
            out_specs=[
                pl.BlockSpec((1, N, 1), lambda b, i: (b, 0, 0)),
                pl.BlockSpec((1, N, 1), lambda b, i: (b, 0, 0)),
            ],
        ),
        compiler_params=pltpu.CompilerParams(
            dimension_semantics=("parallel", "arbitrary")),
    )(f_in, w)

    # Combine per-batch partials; training-mode BatchNorm2d batch statistics
    # (biased variance).  E[y^2] - E[y]^2 in f32, clamped >= 0.
    n_pix = jnp.float32(B * L)
    mean = jnp.sum(ch_sum_p, axis=0) / n_pix                        # (N, 1)
    var = jnp.maximum(jnp.sum(ch_sq_p, axis=0) / n_pix - mean * mean, 0.0)
    inv_std = jax.lax.rsqrt(var + eps)
    scale = gamma[:, None].astype(jnp.float32) * inv_std            # (N, 1)
    shift = beta[:, None].astype(jnp.float32) - mean * scale        # (N, 1)

    # Fold the BN scale into the (tiny) conv weight: relu(scale*(W@x)+shift)
    # == relu((scale*W)@x + shift).  Removes one full-size VPU multiply.
    w_scaled = scale * w                                            # (N, K)

    # ---- pass 2: fused conv + BN + ReLU, lane-dense output ------------------
    y = pl.pallas_call(
        _conv_bn_relu_kernel,
        out_shape=jax.ShapeDtypeStruct((B, N, L), jnp.float32),
        grid_spec=pltpu.PrefetchScalarGridSpec(
            num_scalar_prefetch=0,
            grid=(B, T),
            in_specs=[
                pl.BlockSpec((1, K, tm_eff), lambda b, i: (b, 0, i)),
                pl.BlockSpec((N, K), lambda b, i: (0, 0)),
                pl.BlockSpec((N, 1), lambda b, i: (0, 0)),
            ],
            out_specs=pl.BlockSpec((1, N, tm_eff), lambda b, i: (b, 0, i)),
        ),
        compiler_params=pltpu.CompilerParams(
            dimension_semantics=("parallel", "parallel")),
    )(f_in, w_scaled, shift)

    return y                                                        # (B, N, L)


# ----------------------------------------------------------------------------
# FourierUnit forward (matches the PyTorch module, groups=1, ffc3d=False,
# training-mode BatchNorm).
# ----------------------------------------------------------------------------
@functools.partial(jax.jit, static_argnames=("eps", "tm"))
def fourier_unit_forward(x, conv_weight, bn_gamma, bn_beta, *, eps=1e-5,
                         tm=2048):
    """
    x:           (B, C_in, H, W)     float32, NCHW (same as PyTorch)
    conv_weight: (2*C_out, 2*C_in)   1x1 conv weight, kernel dims squeezed
    bn_gamma:    (2*C_out,)          BatchNorm2d weight
    bn_beta:     (2*C_out,)          BatchNorm2d bias
    """
    B, C, H, Wimg = x.shape

    # rfftn over (-2, -1), ortho norm.
    ffted = jnp.fft.rfft2(x, norm="ortho")                # (B, C, H, Wf) complex
    Wf = ffted.shape[-1]

    # stack(real, imag) -> (B, C, 2, H, Wf) -> (B, 2C, H, Wf) -> (B, 2C, H*Wf)
    # (channel order [c0_re, c0_im, c1_re, ...], identical to the PyTorch view)
    stacked = jnp.stack([jnp.real(ffted), jnp.imag(ffted)], axis=2)
    K = 2 * C
    L = H * Wf
    f_in = stacked.reshape(B, K, L)                       # channels-first, free

    y = _fourier_conv_bn_relu(f_in, conv_weight, bn_gamma, bn_beta,
                              eps=eps, tm=tm)             # (B, N, L)

    # (B, N, L) -> (B, C_out, 2, H, Wf) -> complex -> irfftn(s=(H, W)).
    N = conv_weight.shape[0]
    y = y.reshape(B, N // 2, 2, H, Wf)
    y_complex = jax.lax.complex(y[:, :, 0], y[:, :, 1])   # (B, C_out, H, Wf)
    out = jnp.fft.irfft2(y_complex, s=(H, Wimg), norm="ortho")
    return out


# ----------------------------------------------------------------------------
# Pure-JAX reference (no Pallas) for a correctness check.
# ----------------------------------------------------------------------------
def _reference(x, conv_weight, bn_gamma, bn_beta, eps=1e-5):
    B, C, H, Wimg = x.shape
    ff = jnp.fft.rfft2(x, norm="ortho")
    Wf = ff.shape[-1]
    st = jnp.stack([ff.real, ff.imag], axis=2).reshape(B, 2 * C, H, Wf)
    y = jnp.einsum("nk,bkhw->bnhw", conv_weight, st)
    mean = y.mean(axis=(0, 2, 3), keepdims=True)
    var = y.var(axis=(0, 2, 3), keepdims=True)            # biased (training BN)
    yn = (y - mean) * jax.lax.rsqrt(var + eps)
    yn = yn * bn_gamma[None, :, None, None] + bn_beta[None, :, None, None]
    yr = jnp.maximum(yn, 0.0)
    N = conv_weight.shape[0]
    yc = yr.reshape(B, N // 2, 2, H, Wf)
    comp = jax.lax.complex(yc[:, :, 0], yc[:, :, 1])
    return jnp.fft.irfft2(comp, s=(H, Wimg), norm="ortho")


if __name__ == "__main__":
    # Module config: in_channels = out_channels = 4, groups = 1, ffc3d = False.
    B, C_in, C_out, H, Wimg = 2, 4, 4, 16, 16

    key = jax.random.PRNGKey(0)
    k_x, k_w = jax.random.split(key)

    x = jax.random.normal(k_x, (B, C_in, H, Wimg), dtype=jnp.float32)

    # Conv2d(2*C_in -> 2*C_out, kernel_size=1, bias=False): weight (2Cout, 2Cin)
    conv_weight = (
        jax.random.normal(k_w, (2 * C_out, 2 * C_in), dtype=jnp.float32) * 0.1
    )
    # BatchNorm2d(2*C_out) default init: weight=1, bias=0 (training batch stats).
    bn_gamma = jnp.ones((2 * C_out,), dtype=jnp.float32)
    bn_beta = jnp.zeros((2 * C_out,), dtype=jnp.float32)

    ref = _reference(x, conv_weight, bn_gamma, bn_beta)

    # Single full-extent tile path (L = 16*9 = 144 <= tm).
    out = fourier_unit_forward(x, conv_weight, bn_gamma, bn_beta)
    jax.block_until_ready(out)
    assert out.shape == (B, C_out, H, Wimg), out.shape
    assert jnp.allclose(out, ref, atol=1e-3, rtol=1e-3), (
        float(jnp.max(jnp.abs(out - ref)))
    )

    # Multi-tile path with a ragged last tile (L=144, tm=128 -> tiles of
    # 128 + 16 masked lanes) to exercise the accumulation / masking logic.
    out_tiled = fourier_unit_forward(x, conv_weight, bn_gamma, bn_beta, tm=128)
    jax.block_until_ready(out_tiled)
    assert jnp.allclose(out_tiled, ref, atol=1e-3, rtol=1e-3), (
        float(jnp.max(jnp.abs(out_tiled - ref)))
    )

    print("KERNEL_OK")
</pallas_src>

<mosaic_0001>
module attributes {stable_mosaic.version = 11 : i64} {
  func.func @_conv_stats_kernel(%arg0: i32, %arg1: i32, %arg2: memref<1x8x144xf32, #tpu.memory_space<vmem>>, %arg3: memref<8x8xf32, #tpu.memory_space<vmem>>, %arg4: memref<1x8x1xf32, #tpu.memory_space<vmem>>, %arg5: memref<1x8x1xf32, #tpu.memory_space<vmem>>) attributes {dimension_semantics = [#tpu.dimension_semantics<parallel>, #tpu.dimension_semantics<arbitrary>], iteration_bounds = array<i64: 2, 1>, scalar_prefetch = 0 : i64, scratch_operands = 0 : i64, tpu.core_type = #tpu.core_type<tc>, window_params = [{transform_indices = @transform_0, window_bounds = array<i64: 1, 8, 144>}, {pipeline_mode = #tpu.pipeline_mode<synchronous>, transform_indices = @transform_1, window_bounds = array<i64: 8, 8>}, {transform_indices = @transform_2, window_bounds = array<i64: 1, 8, 1>}, {transform_indices = @transform_3, window_bounds = array<i64: 1, 8, 1>}]} {
    %c0_i32 = arith.constant 0 : i32
    %0 = arith.cmpi eq, %arg1, %c0_i32 : i32
    %1 = arith.extui %0 : i1 to i32
    %c0_i32_0 = arith.constant 0 : i32
    %2 = arith.cmpi ne, %1, %c0_i32_0 : i32
    scf.if %2 {
      %cst_21 = arith.constant 0.000000e+00 : f32
      %31 = vector.broadcast %cst_21 : f32 to vector<1x8x1xf32>
      %c0_22 = arith.constant 0 : index
      %c0_23 = arith.constant 0 : index
      %c0_24 = arith.constant 0 : index
      %32 = vector.load %arg4[%c0_22, %c0_23, %c0_24] : memref<1x8x1xf32, #tpu.memory_space<vmem>>, vector<1x8x1xf32>
      tpu.vector_store %arg4[%c0_22, %c0_23, %c0_24], %31 {strides = array<i32>} : memref<1x8x1xf32, #tpu.memory_space<vmem>>, vector<1x8x1xf32>,
      %cst_25 = arith.constant 0.000000e+00 : f32
      %33 = vector.broadcast %cst_25 : f32 to vector<1x8x1xf32>
      %c0_26 = arith.constant 0 : index
      %c0_27 = arith.constant 0 : index
      %c0_28 = arith.constant 0 : index
      %34 = vector.load %arg5[%c0_26, %c0_27, %c0_28] : memref<1x8x1xf32, #tpu.memory_space<vmem>>, vector<1x8x1xf32>
      tpu.vector_store %arg5[%c0_26, %c0_27, %c0_28], %33 {strides = array<i32>} : memref<1x8x1xf32, #tpu.memory_space<vmem>>, vector<1x8x1xf32>,
    } else {
    }
    %c0 = arith.constant 0 : index
    %c0_1 = arith.constant 0 : index
    %c0_2 = arith.constant 0 : index
    %3 = vector.load %arg2[%c0, %c0_1, %c0_2] : memref<1x8x144xf32, #tpu.memory_space<vmem>>, vector<1x8x144xf32>
    %4 = vector.shape_cast %3 : vector<1x8x144xf32> to vector<8x144xf32>
    %c0_3 = arith.constant 0 : index
    %c0_4 = arith.constant 0 : index
    %5 = vector.load %arg3[%c0_3, %c0_4] : memref<8x8xf32, #tpu.memory_space<vmem>>, vector<8x8xf32>
    %cst = arith.constant dense<0.000000e+00> : vector<8x144xf32>
    %6 = tpu.matmul %5, %4, %cst {dimension_numbers = #tpu.dot_dimension_numbers<[1], [0], [0], [1], [0, 0, 1, 1], [], []>} : vector<8x8xf32>, vector<8x144xf32>, vector<8x144xf32> -> vector<8x144xf32>
    %7 = tpu.iota {dimensions = array<i32: 1>} : vector<8x144xi32>
    %c144_i32 = arith.constant 144 : i32
    %8 = arith.muli %arg1, %c144_i32 : i32
    %c144_i32_5 = arith.constant 144 : i32
    %9 = arith.subi %c144_i32_5, %8 : i32
    %10 = vector.broadcast %9 : i32 to vector<8x144xi32>
    %11 = arith.cmpi slt, %7, %10 : vector<8x144xi32>
    %cst_6 = arith.constant 0.000000e+00 : f32
    %12 = vector.broadcast %cst_6 : f32 to vector<8x144xf32>
    %13 = arith.select %11, %6, %12 : vector<8x144xi1>, vector<8x144xf32>
    %c0_7 = arith.constant 0 : index
    %c0_8 = arith.constant 0 : index
    %c0_9 = arith.constant 0 : index
    %14 = vector.load %arg4[%c0_7, %c0_8, %c0_9] : memref<1x8x1xf32, #tpu.memory_space<vmem>>, vector<1x8x1xf32>
    %15 = vector.shape_cast %14 : vector<1x8x1xf32> to vector<8x1xf32>
    %cst_10 = arith.constant dense<0.000000e+00> : vector<8xf32>
    %16 = vector.multi_reduction <add>, %13, %cst_10 [1] : vector<8x144xf32> to vector<8xf32>
    %17 = vector.shape_cast %16 : vector<8xf32> to vector<8x1xf32>
    %18 = arith.addf %15, %17 : vector<8x1xf32>
    %c0_11 = arith.constant 0 : index
    %c0_12 = arith.constant 0 : index
    %c0_13 = arith.constant 0 : index
    %19 = vector.load %arg4[%c0_11, %c0_12, %c0_13] : memref<1x8x1xf32, #tpu.memory_space<vmem>>, vector<1x8x1xf32>
    %20 = vector.shape_cast %19 : vector<1x8x1xf32> to vector<8x1xf32>
    %21 = vector.shape_cast %18 : vector<8x1xf32> to vector<1x8x1xf32>
    tpu.vector_store %arg4[%c0_11, %c0_12, %c0_13], %21 {strides = array<i32>} : memref<1x8x1xf32, #tpu.memory_space<vmem>>, vector<1x8x1xf32>,
    %c0_14 = arith.constant 0 : index
    %c0_15 = arith.constant 0 : index
    %c0_16 = arith.constant 0 : index
    %22 = vector.load %arg5[%c0_14, %c0_15, %c0_16] : memref<1x8x1xf32, #tpu.memory_space<vmem>>, vector<1x8x1xf32>
    %23 = vector.shape_cast %22 : vector<1x8x1xf32> to vector<8x1xf32>
    %24 = arith.mulf %13, %13 : vector<8x144xf32>
    %cst_17 = arith.constant dense<0.000000e+00> : vector<8xf32>
    %25 = vector.multi_reduction <add>, %24, %cst_17 [1] : vector<8x144xf32> to vector<8xf32>
    %26 = vector.shape_cast %25 : vector<8xf32> to vector<8x1xf32>
    %27 = arith.addf %23, %26 : vector<8x1xf32>
    %c0_18 = arith.constant 0 : index
    %c0_19 = arith.constant 0 : index
    %c0_20 = arith.constant 0 : index
    %28 = vector.load %arg5[%c0_18, %c0_19, %c0_20] : memref<1x8x1xf32, #tpu.memory_space<vmem>>, vector<1x8x1xf32>
    %29 = vector.shape_cast %28 : vector<1x8x1xf32> to vector<8x1xf32>
    %30 = vector.shape_cast %27 : vector<8x1xf32> to vector<1x8x1xf32>
    tpu.vector_store %arg5[%c0_18, %c0_19, %c0_20], %30 {strides = array<i32>} : memref<1x8x1xf32, #tpu.memory_space<vmem>>, vector<1x8x1xf32>,
    return
  }
  func.func @transform_0(%arg0: i32, %arg1: i32) -> (i32, i32, i32) {
    %c0_i32 = arith.constant 0 : i32
    %c0_i32_0 = arith.constant 0 : i32
    return %arg0, %c0_i32, %arg1 : i32, i32, i32
  }
  func.func @transform_1(%arg0: i32, %arg1: i32) -> (i32, i32) {
    %c0_i32 = arith.constant 0 : i32
    %c0_i32_0 = arith.constant 0 : i32
    %c0_i32_1 = arith.constant 0 : i32
    return %c0_i32, %c0_i32_0 : i32, i32
  }
  func.func @transform_2(%arg0: i32, %arg1: i32) -> (i32, i32, i32) {
    %c0_i32 = arith.constant 0 : i32
    %c0_i32_0 = arith.constant 0 : i32
    %c0_i32_1 = arith.constant 0 : i32
    return %arg0, %c0_i32, %c0_i32_0 : i32, i32, i32
  }
  func.func @transform_3(%arg0: i32, %arg1: i32) -> (i32, i32, i32) {
    %c0_i32 = arith.constant 0 : i32
    %c0_i32_0 = arith.constant 0 : i32
    %c0_i32_1 = arith.constant 0 : i32
    return %arg0, %c0_i32, %c0_i32_0 : i32, i32, i32
  }
}

module attributes {stable_mosaic.version = 11 : i64} {
  func.func @_conv_bn_relu_kernel(%arg0: i32, %arg1: i32, %arg2: memref<1x8x144xf32, #tpu.memory_space<vmem>>, %arg3: memref<8x8xf32, #tpu.memory_space<vmem>>, %arg4: memref<8x1xf32, #tpu.memory_space<vmem>>, %arg5: memref<1x8x144xf32, #tpu.memory_space<vmem>>) attributes {dimension_semantics = [#tpu.dimension_semantics<parallel>, #tpu.dimension_semantics<parallel>], iteration_bounds = array<i64: 2, 1>, scalar_prefetch = 0 : i64, scratch_operands = 0 : i64, tpu.core_type = #tpu.core_type<tc>, window_params = [{transform_indices = @transform_0, window_bounds = array<i64: 1, 8, 144>}, {pipeline_mode = #tpu.pipeline_mode<synchronous>, transform_indices = @transform_1, window_bounds = array<i64: 8, 8>}, {pipeline_mode = #tpu.pipeline_mode<synchronous>, transform_indices = @transform_2, window_bounds = array<i64: 8, 1>}, {transform_indices = @transform_3, window_bounds = array<i64: 1, 8, 144>}]} {
    %c0 = arith.constant 0 : index
    %c0_0 = arith.constant 0 : index
    %0 = vector.load %arg3[%c0, %c0_0] : memref<8x8xf32, #tpu.memory_space<vmem>>, vector<8x8xf32>
    %c0_1 = arith.constant 0 : index
    %c0_2 = arith.constant 0 : index
    %c0_3 = arith.constant 0 : index
    %1 = vector.load %arg2[%c0_1, %c0_2, %c0_3] : memref<1x8x144xf32, #tpu.memory_space<vmem>>, vector<1x8x144xf32>
    %2 = vector.shape_cast %1 : vector<1x8x144xf32> to vector<8x144xf32>
    %cst = arith.constant dense<0.000000e+00> : vector<8x144xf32>
    %3 = tpu.matmul %0, %2, %cst {dimension_numbers = #tpu.dot_dimension_numbers<[1], [0], [0], [1], [0, 0, 1, 1], [], []>} : vector<8x8xf32>, vector<8x144xf32>, vector<8x144xf32> -> vector<8x144xf32>
    %c0_4 = arith.constant 0 : index
    %c0_5 = arith.constant 0 : index
    %4 = vector.load %arg4[%c0_4, %c0_5] : memref<8x1xf32, #tpu.memory_space<vmem>>, vector<8x1xf32>
    %5 = vector.broadcast %4 : vector<8x1xf32> to vector<8x144xf32>
    %6 = arith.addf %3, %5 : vector<8x144xf32>
    %cst_6 = arith.constant 0.000000e+00 : f32
    %7 = vector.broadcast %cst_6 : f32 to vector<8x144xf32>
    %8 = arith.maximumf %6, %7 : vector<8x144xf32>
    %c0_7 = arith.constant 0 : index
    %c0_8 = arith.constant 0 : index
    %c0_9 = arith.constant 0 : index
    %9 = vector.load %arg5[%c0_7, %c0_8, %c0_9] : memref<1x8x144xf32, #tpu.memory_space<vmem>>, vector<1x8x144xf32>
    %10 = vector.shape_cast %9 : vector<1x8x144xf32> to vector<8x144xf32>
    %11 = vector.shape_cast %8 : vector<8x144xf32> to vector<1x8x144xf32>
    tpu.vector_store %arg5[%c0_7, %c0_8, %c0_9], %11 {strides = array<i32>} : memref<1x8x144xf32, #tpu.memory_space<vmem>>, vector<1x8x144xf32>,
    return
  }
  func.func @transform_0(%arg0: i32, %arg1: i32) -> (i32, i32, i32) {
    %c0_i32 = arith.constant 0 : i32
    %c0_i32_0 = arith.constant 0 : i32
    return %arg0, %c0_i32, %arg1 : i32, i32, i32
  }
  func.func @transform_1(%arg0: i32, %arg1: i32) -> (i32, i32) {
    %c0_i32 = arith.constant 0 : i32
    %c0_i32_0 = arith.constant 0 : i32
    %c0_i32_1 = arith.constant 0 : i32
    return %c0_i32, %c0_i32_0 : i32, i32
  }
  func.func @transform_2(%arg0: i32, %arg1: i32) -> (i32, i32) {
    %c0_i32 = arith.constant 0 : i32
    %c0_i32_0 = arith.constant 0 : i32
    %c0_i32_1 = arith.constant 0 : i32
    return %c0_i32, %c0_i32_0 : i32, i32
  }
  func.func @transform_3(%arg0: i32, %arg1: i32) -> (i32, i32, i32) {
    %c0_i32 = arith.constant 0 : i32
    %c0_i32_0 = arith.constant 0 : i32
    return %arg0, %c0_i32, %arg1 : i32, i32, i32
  }
}

</mosaic_0001>

<llo_original>
// kernel: fourier_unit_forward.3
$region0: #{fourier_unit_forward.3}
  #allocation0 [shape = 'u32[]', space=smem, size = 0x4, offset = 0x4, fixed_abs, tag = 'smem constant byte address 0x4 - core index']
  #allocation1 [shape = 'u32[144,128]{1,0:T(1,128)}', space=vmem, size = 0x12000, scoped, tag = 'internal scratch']
  %s0 = inlined_call_operand.vmem [shape: f32[2,8,144], index: 0, kind: input, shape index: {}]
  %s1 = inlined_call_operand.vmem [shape: f32[8,8], index: 1, kind: input, shape index: {}]
  %s2 = inlined_call_operand.vmem [shape: f32[8,1], index: 2, kind: input, shape index: {}]
  %s3 = inlined_call_operand.vmem [shape: f32[2,8,144], index: 3, kind: output, shape index: {}]
  %s4 = sld [smem:[#allocation0]]
  $region45: #{fourier_unit_forward.3} parent=0
    _
  %s6 = ssub.s32 1, %s4
  %s7 = scalar_select 0, %s6, %s4
  loop: start=0, step=1, limit=4
  $region2: #{fourier_unit_forward.3} parent=0 // loop_pre_header
    _
  $region3: #{fourier_unit_forward.3} parent=0 // loop_header
    %s9 = sphi 0, %s13
    %p10 = scmp.ge.s32.totalorder %s9, 4
    %s16 = sphi 0, %s28
    %s17 = sphi 0, %s24
    %s18 = sphi 0, %s16
    %s19 = sphi 0, %s17
    %s20 = sphi 0, %s18
    %s21 = sphi 0, %s19
    %s33 = sphi 0, %s35
    %s36 = sphi 0, %s33
    %s37 = sphi 0, %s36
    %s53 = sphi 0, %s37
    %s57 = sphi 0, %s57
    %s59 = sphi 0, %s57
    %s60 = sphi 0, %s59
    %s74 = sphi 0, %s60
    %s78 = sphi 0, %s78
    %s80 = sphi 0, %s78
    %s81 = sphi 0, %s80
    %s95 = sphi 0, %s81
    %s103 = sphi 0, %s105
    %s106 = sphi 0, %s103
    %s107 = sphi 0, %s106
    %s123 = sphi 0, %s107
  $region4: #{fourier_unit_forward.3} parent=0 // loop_header_branch
    %12 = sbr.rel (%p10) target = $region8
  $region5: #{fourier_unit_forward.3} parent=0 // loop_body
    %s14 = ssub.s32 %s9, 1
    %s15 = ssub.s32 %s9, 2
    %s22 = sadd.s32 1, %s17
    %p23 = scmp.ge.s32.totalorder %s22, 1
    %s24 = scalar_select %p23, 0, %s22
    %s25 = sadd.s32 1, %s16
    %s26 = scalar_select %p23, %s25, %s16
    %p27 = scmp.ge.s32.totalorder %s26, 2
    %s28 = scalar_select %p27, 0, %s26
    %s29 = ssub.s32 %s16, %s28
    %s30 = ssub.s32 %s17, %s24
    %s31 = sor.u32 %s29, %s30
    %p32 = scmp.eq.s32.totalorder %s31, 0
    %s34 = sadd.s32 %s33, 1
    %s35 = scalar_select %p32, %s33, %s34
    %p38 = pneg %p32
    %p39 = scmp.eq.s32.totalorder %s9, 1
    %p40 = por %p38, %p39
    %p41 = scmp.ne.s32.totalorder %s33, %s36
    %p42 = scmp.eq.s32.totalorder %s9, 0
    %p43 = por %p41, %p42
    %p44 = scmp.ne.s32.totalorder %s33, %s36
    %p45 = scmp.eq.s32.totalorder %s14, 1
    %p46 = por %p44, %p45
    %p47 = scmp.ne.s32.totalorder %s36, %s37
    %p48 = scmp.eq.s32.totalorder %s14, 0
    %p49 = por %p47, %p48
    %p50 = scmp.ne.s32.totalorder %s36, %s37
    %p51 = scmp.eq.s32.totalorder %s15, 1
    %p52 = por %p50, %p51
    %p54 = scmp.ne.s32.totalorder %s37, %s53
    %p55 = scmp.eq.s32.totalorder %s15, 0
    %p56 = por %p54, %p55
    %s58 = sadd.s32 %s57, 1
    %p61 = scmp.eq.s32.totalorder %s9, 1
    %p62 = scmp.ne.s32.totalorder %s57, %s59
    %p63 = scmp.eq.s32.totalorder %s9, 0
    %p64 = por %p62, %p63
    %p65 = scmp.ne.s32.totalorder %s57, %s59
    %p66 = scmp.eq.s32.totalorder %s14, 1
    %p67 = por %p65, %p66
    %p68 = scmp.ne.s32.totalorder %s59, %s60
    %p69 = scmp.eq.s32.totalorder %s14, 0
    %p70 = por %p68, %p69
    %p71 = scmp.ne.s32.totalorder %s59, %s60
    %p72 = scmp.eq.s32.totalorder %s15, 1
    %p73 = por %p71, %p72
    %p75 = scmp.ne.s32.totalorder %s60, %s74
    %p76 = scmp.eq.s32.totalorder %s15, 0
    %p77 = por %p75, %p76
    %s79 = sadd.s32 %s78, 1
    %p82 = scmp.eq.s32.totalorder %s9, 1
    %p83 = scmp.ne.s32.totalorder %s78, %s80
    %p84 = scmp.eq.s32.totalorder %s9, 0
    %p85 = por %p83, %p84
    %p86 = scmp.ne.s32.totalorder %s78, %s80
    %p87 = scmp.eq.s32.totalorder %s14, 1
    %p88 = por %p86, %p87
    %p89 = scmp.ne.s32.totalorder %s80, %s81
    %p90 = scmp.eq.s32.totalorder %s14, 0
    %p91 = por %p89, %p90
    %p92 = scmp.ne.s32.totalorder %s80, %s81
    %p93 = scmp.eq.s32.totalorder %s15, 1
    %p94 = por %p92, %p93
    %p96 = scmp.ne.s32.totalorder %s81, %s95
    %p97 = scmp.eq.s32.totalorder %s15, 0
    %p98 = por %p96, %p97
    %s99 = ssub.s32 %s16, %s28
    %s100 = ssub.s32 %s17, %s24
    %s101 = sor.u32 %s99, %s100
    %p102 = scmp.eq.s32.totalorder %s101, 0
    %s104 = sadd.s32 %s103, 1
    %s105 = scalar_select %p102, %s103, %s104
    %p108 = pneg %p102
    %p109 = scmp.eq.s32.totalorder %s9, 1
    %p110 = por %p108, %p109
    %p111 = scmp.ne.s32.totalorder %s103, %s106
    %p112 = scmp.eq.s32.totalorder %s9, 0
    %p113 = por %p111, %p112
    %p114 = scmp.ne.s32.totalorder %s103, %s106
    %p115 = scmp.eq.s32.totalorder %s14, 1
    %p116 = por %p114, %p115
    %p117 = scmp.ne.s32.totalorder %s106, %s107
    %p118 = scmp.eq.s32.totalorder %s14, 0
    %p119 = por %p117, %p118
    %p120 = scmp.ne.s32.totalorder %s106, %s107
    %p121 = scmp.eq.s32.totalorder %s15, 1
    %p122 = por %p120, %p121
    %p124 = scmp.ne.s32.totalorder %s107, %s123
    %p125 = scmp.eq.s32.totalorder %s15, 0
    %p126 = por %p124, %p125
    %p127 = scmp.le.s32.totalorder 1, %s9
    %p128 = scmp.lt.s32.totalorder %s9, 3
    %p129 = pnand %p127, %p128
    %p130 = pneg %p129
    // Predicated region
    $region9: #{fourier_unit_forward.3} parent=5 // pred_check
      _
    $region10: #{fourier_unit_forward.3} parent=5 // pred_check_branch
      %132 = sbr.rel (%p129) target = $region12
    $region11: #{fourier_unit_forward.3} parent=5 // pred_region
      %s133 = ssub.s32 %s9, 1
      // Predicated region
      $region13: #{fourier_unit_forward.3} parent=11 // pred_check
        %p134 = pneg %p70
      $region14: #{fourier_unit_forward.3} parent=11 // pred_check_branch
        %136 = sbr.rel (%p134) target = $region16
      $region15: #{fourier_unit_forward.3} parent=11 // pred_region
        _
      $region16: #{fourier_unit_forward.3} parent=11 // pred_fallthru
        _
      // Predicated region
      $region17: #{fourier_unit_forward.3} parent=11 // pred_check
        %p137 = pneg %p91
      $region18: #{fourier_unit_forward.3} parent=11 // pred_check_branch
        %139 = sbr.rel (%p137) target = $region20
      $region19: #{fourier_unit_forward.3} parent=11 // pred_region
        _
      $region20: #{fourier_unit_forward.3} parent=11 // pred_fallthru
        _
    $region12: #{fourier_unit_forward.3} parent=5 // pred_fallthru
      _
    %p140 = scmp.lt.s32.totalorder %s9, 2
    // Predicated region
    $region21: #{fourier_unit_forward.3} parent=5 // pred_check
      %p141 = pneg %p140
    $region22: #{fourier_unit_forward.3} parent=5 // pred_check_branch
      %143 = sbr.rel (%p141) target = $region24
    $region23: #{fourier_unit_forward.3} parent=5 // pred_region
      // Predicated region
      $region25: #{fourier_unit_forward.3} parent=23 // pred_check
        %p144 = pneg %p43
      $region26: #{fourier_unit_forward.3} parent=23 // pred_check_branch
        %146 = sbr.rel (%p144) target = $region28
      $region27: #{fourier_unit_forward.3} parent=23 // pred_region
        %s147 = smul.u32 2, %s17
        %p148 = scmp.lt.s32.totalorder %s16, 1
        %s149 = scalar_select %p148, %s16, 1
        %p150 = scmp.lt.s32.totalorder %s147, 1
        %s151 = scalar_select %p150, %s147, 1
        %s152 = smul.addr %s149, 2
        %s153 = sadd.s32 %s151, %s152
        %s154 = smul.addr %s153, 8
        %s155 = scalar_lea.vmem %s0, %s154
        %s156 = smul.u32 2, %s17
      $region28: #{fourier_unit_forward.3} parent=23 // pred_fallthru
        _
    $region24: #{fourier_unit_forward.3} parent=5 // pred_fallthru
      _
    %p157 = scmp.le.s32.totalorder 1, %s9
    %p158 = scmp.lt.s32.totalorder %s9, 3
    %p159 = pnand %p157, %p158
    %p160 = pneg %p159
    // Predicated region
    $region29: #{fourier_unit_forward.3} parent=5 // pred_check
      _
    $region30: #{fourier_unit_forward.3} parent=5 // pred_check_branch
      %162 = sbr.rel (%p159) target = $region32
    $region31: #{fourier_unit_forward.3} parent=5 // pred_region
      %s163 = ssub.s32 %s9, 1
      %s164 = smul.u32 2, %s19
      %p165 = scmp.lt.s32.totalorder %s18, 1
      %s166 = scalar_select %p165, %s18, 1
      %p167 = scmp.lt.s32.totalorder %s164, 1
      %s168 = scalar_select %p167, %s164, 1
      %s169 = smul.addr %s166, 2
      %s170 = sadd.s32 %s168, %s169
      %s171 = smul.addr %s170, 8
      %s172 = scalar_lea.vmem %s0, %s171
      %p173 = pneg %p49
      %p174 = pneg %p46
      %p175 = pneg %p70
      %p176 = pneg %p67
      %p177 = pneg %p91
      %p178 = pneg %p88
      %p179 = pneg %p119
      %p180 = pneg %p116
      %s181 = smul.u32 2, %s19
      %p182 = scmp.lt.s32.totalorder %s18, 1
      %s183 = scalar_select %p182, %s18, 1
      %p184 = scmp.lt.s32.totalorder %s181, 1
      %s185 = scalar_select %p184, %s181, 1
      %s186 = smul.addr %s183, 2
      %s187 = sadd.s32 %s185, %s186
      %s188 = smul.addr %s187, 8
      %s189 = scalar_lea.vmem %s3, %s188
      %s190 = smul.u32 2, %s19
      %p191 = scmp.lt.s32.totalorder %s18, 1
      %s192 = scalar_select %p191, %s18, 1
      %p193 = scmp.lt.s32.totalorder %s190, 1
      %s194 = scalar_select %p193, %s190, 1
      %s195 = smul.addr %s192, 2
      %s196 = sadd.s32 %s194, %s195
      %s197 = smul.addr %s196, 8
      %s198 = scalar_lea.vmem %s0, %s197
      %s199 = smul.u32 2, %s19
      %s200 = smul.u32 2, %s19
      %p201 = scmp.lt.s32.totalorder %s18, 1
      %s202 = scalar_select %p201, %s18, 1
      %p203 = scmp.lt.s32.totalorder %s200, 1
      %s204 = scalar_select %p203, %s200, 1
      %s205 = smul.addr %s202, 2
      %s206 = sadd.s32 %s204, %s205
      %s207 = smul.addr %s206, 8
      %s208 = scalar_lea.vmem %s3, %s207
      %s209 = smul.u32 2, %s19
      %v210 = vld [vmem:[%s1] sm:$0xff]
      %v211 = vld [vmem:[%s198] sm:$0xff]
      %v212 = vld [vmem:[%s198 + $0x8] sm:$0xff]
      %v213 = vld [vmem:[%s2] sm:$0xff]
      %215 = vset.pattern.permute.xlu0 0
      %216 = vperm.xlu0 %215, %v213
      %v217 = vpop.permute.xlu0 %216
      %vm219 = vcmask 64512
      %v221 = vsel %vm219, %v210, 0
      %223 = vmatprep.subr.mxu0 %v212
      %224 = vmatpush1.msra.mxu0 %v211
      %225 = vmatprep.subr.mxu0 0.0
      %226 = vmatpush1.msra.mxu0 0.0
      %227 = vmatprep.subr.mxu0 0.0
      %228 = vmatpush1.msra.mxu0 0.0
      %229 = vmatprep.subr.mxu0 0.0
      %230 = vmatpush1.msra.mxu0 0.0
      %231 = vmatprep.subr.mxu0 0.0
      %232 = vmatpush1.msra.mxu0 0.0
      %233 = vmatprep.subr.mxu0 0.0
      %234 = vmatpush1.msra.mxu0 0.0
      %235 = vmatprep.subr.mxu0 0.0
      %236 = vmatpush1.msra.mxu0 0.0
      %237 = vmatprep.subr.mxu0 0.0
      %238 = vmatpush1.msra.mxu0 0.0
      %239 = vmatprep.subr.mxu0 0.0
      %240 = vmatpush1.msra.mxu0 0.0
      %241 = vmatprep.subr.mxu0 0.0
      %242 = vmatpush1.msra.mxu0 0.0
      %243 = vmatprep.subr.mxu0 0.0
      %244 = vmatpush1.msra.mxu0 0.0
      %245 = vmatprep.subr.mxu0 0.0
      %246 = vmatpush1.msra.mxu0 0.0
      %247 = vmatprep.subr.mxu0 0.0
      %248 = vmatpush1.msra.mxu0 0.0
      %249 = vmatprep.subr.mxu0 0.0
      %250 = vmatpush1.msra.mxu0 0.0
      %251 = vmatprep.subr.mxu0 0.0
      %252 = vmatpush1.msra.mxu0 0.0
      %253 = vmatprep.subr.mxu0 0.0
      %254 = vmatpush1.msra.mxu0 0.0
      %255 = vmatprep.subr.mxu0 0.0
      %256 = vmatpush1.msra.mxu0 0.0
      %257 = vmatprep.subr.mxu0 0.0
      %258 = vmatpush1.msra.mxu0 0.0
      %259 = vmatprep.subr.mxu0 0.0
      %260 = vmatpush1.msra.mxu0 0.0
      %261 = vmatprep.subr.mxu0 0.0
      %262 = vmatpush1.msra.mxu0 0.0
      %263 = vmatprep.subr.mxu0 0.0
      %264 = vmatpush1.msra.mxu0 0.0
      %265 = vmatprep.subr.mxu0 0.0
      %266 = vmatpush1.msra.mxu0 0.0
      %267 = vmatprep.subr.mxu0 0.0
      %268 = vmatpush1.msra.mxu0 0.0
      %269 = vmatprep.subr.mxu0 0.0
      %270 = vmatpush1.msra.mxu0 0.0
      %271 = vmatprep.subr.mxu0 0.0
      %272 = vmatpush1.msra.mxu0 0.0
      %273 = vmatprep.subr.mxu0 0.0
      %274 = vmatpush1.msra.mxu0 0.0
      %275 = vmatprep.subr.mxu0 0.0
      %276 = vmatpush1.msra.mxu0 0.0
      %277 = vmatprep.subr.mxu0 0.0
      %278 = vmatpush1.msra.mxu0 0.0
      %279 = vmatprep.subr.mxu0 0.0
      %280 = vmatpush1.msra.mxu0 0.0
      %281 = vmatprep.subr.mxu0 0.0
      %282 = vmatpush1.msra.mxu0 0.0
      %283 = vmatprep.subr.mxu0 0.0
      %284 = vmatpush1.msra.mxu0 0.0
      %285 = vmatprep.subr.mxu0 0.0
      %286 = vmatpush1.msra.mxu0 0.0
      %287 = vmatprep.mubr.f32.mxu0 0.0
      %288 = vmatmul.mubr.f32.gmra.mrb[0].mxu0 %v221
      %v289 = vpop.f32.mrb[0].mxu0
      %v290 = vadd.f32 %v217, %v289
      %v291 = vpop.f32.mrb[0].mxu0
      %v292 = vadd.f32 %v217, %v291
      %293 = vdwg.mxu0
      %v294 = vmax.f32 %v290, 0.0
      %v295 = vmax.f32 %v292, 0.0
      %296 = vst [vmem:[%s208] sm:$0xff] %v294
      %vm297 = vcmask 130048
      %298 = vst.msk [vmem:[%s208 + $0x8] sm:$0xff] %vm297, %v295
      %s299 = smul.u32 2, %s19
      %p300 = scmp.lt.s32.totalorder %s18, 1
      %s301 = scalar_select %p300, %s18, 1
      %p302 = scmp.lt.s32.totalorder %s299, 1
      %s303 = scalar_select %p302, %s299, 1
      %s304 = smul.addr %s301, 2
      %s305 = sadd.s32 %s303, %s304
      %s306 = smul.addr %s305, 8
      %s307 = scalar_lea.vmem %s3, %s306
      // Predicated region
      $region33: #{fourier_unit_forward.3} parent=31 // pred_check
        %p308 = pneg %p116
      $region34: #{fourier_unit_forward.3} parent=31 // pred_check_branch
        %310 = sbr.rel (%p308) target = $region36
      $region35: #{fourier_unit_forward.3} parent=31 // pred_region
        %s311 = smul.u32 2, %s19
      $region36: #{fourier_unit_forward.3} parent=31 // pred_fallthru
        _
    $region32: #{fourier_unit_forward.3} parent=5 // pred_fallthru
      _
    %p312 = scmp.le.s32.totalorder 2, %s9
    // Predicated region
    $region37: #{fourier_unit_forward.3} parent=5 // pred_check
      %p313 = pneg %p312
    $region38: #{fourier_unit_forward.3} parent=5 // pred_check_branch
      %315 = sbr.rel (%p313) target = $region40
    $region39: #{fourier_unit_forward.3} parent=5 // pred_region
      %s316 = ssub.s32 %s9, 2
      // Predicated region
      $region41: #{fourier_unit_forward.3} parent=39 // pred_check
        %p317 = pneg %p122
      $region42: #{fourier_unit_forward.3} parent=39 // pred_check_branch
        %319 = sbr.rel (%p317) target = $region44
      $region43: #{fourier_unit_forward.3} parent=39 // pred_region
        %s320 = smul.u32 2, %s21
        %p321 = scmp.lt.s32.totalorder %s20, 1
        %s322 = scalar_select %p321, %s20, 1
        %p323 = scmp.lt.s32.totalorder %s320, 1
        %s324 = scalar_select %p323, %s320, 1
        %s325 = smul.addr %s322, 2
        %s326 = sadd.s32 %s324, %s325
        %s327 = smul.addr %s326, 8
        %s328 = scalar_lea.vmem %s3, %s327
      $region44: #{fourier_unit_forward.3} parent=39 // pred_fallthru
        _
    $region40: #{fourier_unit_forward.3} parent=5 // pred_fallthru
      _
  $region6: #{fourier_unit_forward.3} parent=0 // loop_footer
    %s13 = sadd.s32 1, %s9
  $region7: #{fourier_unit_forward.3} parent=0 // loop_footer_branch
    %8 = sbr.rel target = $region3
  $region8: #{fourier_unit_forward.3} parent=0 // loop_exit
    _

// kernel: fourier_unit_forward.2
$region0: #{fourier_unit_forward.2}
  #allocation0 [shape = 'u32[]', space=smem, size = 0x4, offset = 0x4, fixed_abs, tag = 'smem constant byte address 0x4 - core index']
  #allocation1 [shape = 'u32[144,128]{1,0:T(1,128)}', space=vmem, size = 0x12000, scoped, tag = 'internal scratch']
  %s0 = inlined_call_operand.vmem [shape: f32[2,8,144], index: 0, kind: input, shape index: {}]
  %s1 = inlined_call_operand.vmem [shape: f32[8,8], index: 1, kind: input, shape index: {}]
  %s2 = inlined_call_operand.vmem [shape: f32[2,8,1], index: 2, kind: output, shape index: {0}]
  %s3 = inlined_call_operand.vmem [shape: f32[2,8,1], index: 3, kind: output, shape index: {1}]
  %4 = xla_tuple %s2, %s3
  %s5 = sld [smem:[#allocation0]]
  $region53: #{fourier_unit_forward.2} parent=0
    _
  %s7 = ssub.s32 1, %s5
  %s8 = scalar_select 0, %s7, %s5
  loop: start=0, step=1, limit=4
  $region2: #{fourier_unit_forward.2} parent=0 // loop_pre_header
    _
  $region3: #{fourier_unit_forward.2} parent=0 // loop_header
    %s10 = sphi 0, %s14
    %p11 = scmp.ge.s32.totalorder %s10, 4
    %s17 = sphi 0, %s29
    %s18 = sphi 0, %s25
    %s19 = sphi 0, %s17
    %s20 = sphi 0, %s18
    %s21 = sphi 0, %s19
    %s22 = sphi 0, %s20
    %s34 = sphi 0, %s36
    %s37 = sphi 0, %s34
    %s38 = sphi 0, %s37
    %s54 = sphi 0, %s38
    %s58 = sphi 0, %s58
    %s60 = sphi 0, %s58
    %s61 = sphi 0, %s60
    %s75 = sphi 0, %s61
    %s81 = sphi 0, %s83
    %s84 = sphi 0, %s81
    %s85 = sphi 0, %s84
    %s101 = sphi 0, %s85
    %s107 = sphi 0, %s109
    %s110 = sphi 0, %s107
    %s111 = sphi 0, %s110
    %s127 = sphi 0, %s111
  $region4: #{fourier_unit_forward.2} parent=0 // loop_header_branch
    %13 = sbr.rel (%p11) target = $region8
  $region5: #{fourier_unit_forward.2} parent=0 // loop_body
    %s15 = ssub.s32 %s10, 1
    %s16 = ssub.s32 %s10, 2
    %s23 = sadd.s32 1, %s18
    %p24 = scmp.ge.s32.totalorder %s23, 1
    %s25 = scalar_select %p24, 0, %s23
    %s26 = sadd.s32 1, %s17
    %s27 = scalar_select %p24, %s26, %s17
    %p28 = scmp.ge.s32.totalorder %s27, 2
    %s29 = scalar_select %p28, 0, %s27
    %s30 = ssub.s32 %s17, %s29
    %s31 = ssub.s32 %s18, %s25
    %s32 = sor.u32 %s30, %s31
    %p33 = scmp.eq.s32.totalorder %s32, 0
    %s35 = sadd.s32 %s34, 1
    %s36 = scalar_select %p33, %s34, %s35
    %p39 = pneg %p33
    %p40 = scmp.eq.s32.totalorder %s10, 1
    %p41 = por %p39, %p40
    %p42 = scmp.ne.s32.totalorder %s34, %s37
    %p43 = scmp.eq.s32.totalorder %s10, 0
    %p44 = por %p42, %p43
    %p45 = scmp.ne.s32.totalorder %s34, %s37
    %p46 = scmp.eq.s32.totalorder %s15, 1
    %p47 = por %p45, %p46
    %p48 = scmp.ne.s32.totalorder %s37, %s38
    %p49 = scmp.eq.s32.totalorder %s15, 0
    %p50 = por %p48, %p49
    %p51 = scmp.ne.s32.totalorder %s37, %s38
    %p52 = scmp.eq.s32.totalorder %s16, 1
    %p53 = por %p51, %p52
    %p55 = scmp.ne.s32.totalorder %s38, %s54
    %p56 = scmp.eq.s32.totalorder %s16, 0
    %p57 = por %p55, %p56
    %s59 = sadd.s32 %s58, 1
    %p62 = scmp.eq.s32.totalorder %s10, 1
    %p63 = scmp.ne.s32.totalorder %s58, %s60
    %p64 = scmp.eq.s32.totalorder %s10, 0
    %p65 = por %p63, %p64
    %p66 = scmp.ne.s32.totalorder %s58, %s60
    %p67 = scmp.eq.s32.totalorder %s15, 1
    %p68 = por %p66, %p67
    %p69 = scmp.ne.s32.totalorder %s60, %s61
    %p70 = scmp.eq.s32.totalorder %s15, 0
    %p71 = por %p69, %p70
    %p72 = scmp.ne.s32.totalorder %s60, %s61
    %p73 = scmp.eq.s32.totalorder %s16, 1
    %p74 = por %p72, %p73
    %p76 = scmp.ne.s32.totalorder %s61, %s75
    %p77 = scmp.eq.s32.totalorder %s16, 0
    %p78 = por %p76, %p77
    %s79 = ssub.s32 %s17, %s29
    %p80 = scmp.eq.s32.totalorder %s79, 0
    %s82 = sadd.s32 %s81, 1
    %s83 = scalar_select %p80, %s81, %s82
    %p86 = pneg %p80
    %p87 = scmp.eq.s32.totalorder %s10, 1
    %p88 = por %p86, %p87
    %p89 = scmp.ne.s32.totalorder %s81, %s84
    %p90 = scmp.eq.s32.totalorder %s10, 0
    %p91 = por %p89, %p90
    %p92 = scmp.ne.s32.totalorder %s81, %s84
    %p93 = scmp.eq.s32.totalorder %s15, 1
    %p94 = por %p92, %p93
    %p95 = scmp.ne.s32.totalorder %s84, %s85
    %p96 = scmp.eq.s32.totalorder %s15, 0
    %p97 = por %p95, %p96
    %p98 = scmp.ne.s32.totalorder %s84, %s85
    %p99 = scmp.eq.s32.totalorder %s16, 1
    %p100 = por %p98, %p99
    %p102 = scmp.ne.s32.totalorder %s85, %s101
    %p103 = scmp.eq.s32.totalorder %s16, 0
    %p104 = por %p102, %p103
    %s105 = ssub.s32 %s17, %s29
    %p106 = scmp.eq.s32.totalorder %s105, 0
    %s108 = sadd.s32 %s107, 1
    %s109 = scalar_select %p106, %s107, %s108
    %p112 = pneg %p106
    %p113 = scmp.eq.s32.totalorder %s10, 1
    %p114 = por %p112, %p113
    %p115 = scmp.ne.s32.totalorder %s107, %s110
    %p116 = scmp.eq.s32.totalorder %s10, 0
    %p117 = por %p115, %p116
    %p118 = scmp.ne.s32.totalorder %s107, %s110
    %p119 = scmp.eq.s32.totalorder %s15, 1
    %p120 = por %p118, %p119
    %p121 = scmp.ne.s32.totalorder %s110, %s111
    %p122 = scmp.eq.s32.totalorder %s15, 0
    %p123 = por %p121, %p122
    %p124 = scmp.ne.s32.totalorder %s110, %s111
    %p125 = scmp.eq.s32.totalorder %s16, 1
    %p126 = por %p124, %p125
    %p128 = scmp.ne.s32.totalorder %s111, %s127
    %p129 = scmp.eq.s32.totalorder %s16, 0
    %p130 = por %p128, %p129
    %p131 = scmp.le.s32.totalorder 1, %s10
    %p132 = scmp.lt.s32.totalorder %s10, 3
    %p133 = pnand %p131, %p132
    %p134 = pneg %p133
    // Predicated region
    $region9: #{fourier_unit_forward.2} parent=5 // pred_check
      _
    $region10: #{fourier_unit_forward.2} parent=5 // pred_check_branch
      %136 = sbr.rel (%p133) target = $region12
    $region11: #{fourier_unit_forward.2} parent=5 // pred_region
      %s137 = ssub.s32 %s10, 1
      // Predicated region
      $region13: #{fourier_unit_forward.2} parent=11 // pred_check
        %p138 = pneg %p71
      $region14: #{fourier_unit_forward.2} parent=11 // pred_check_branch
        %140 = sbr.rel (%p138) target = $region16
      $region15: #{fourier_unit_forward.2} parent=11 // pred_region
        _
      $region16: #{fourier_unit_forward.2} parent=11 // pred_fallthru
        _
    $region12: #{fourier_unit_forward.2} parent=5 // pred_fallthru
      _
    %p141 = scmp.lt.s32.totalorder %s10, 2
    // Predicated region
    $region17: #{fourier_unit_forward.2} parent=5 // pred_check
      %p142 = pneg %p141
    $region18: #{fourier_unit_forward.2} parent=5 // pred_check_branch
      %144 = sbr.rel (%p142) target = $region20
    $region19: #{fourier_unit_forward.2} parent=5 // pred_region
      // Predicated region
      $region21: #{fourier_unit_forward.2} parent=19 // pred_check
        %p145 = pneg %p44
      $region22: #{fourier_unit_forward.2} parent=19 // pred_check_branch
        %147 = sbr.rel (%p145) target = $region24
      $region23: #{fourier_unit_forward.2} parent=19 // pred_region
        %s148 = smul.u32 2, %s18
        %p149 = scmp.lt.s32.totalorder %s17, 1
        %s150 = scalar_select %p149, %s17, 1
        %p151 = scmp.lt.s32.totalorder %s148, 1
        %s152 = scalar_select %p151, %s148, 1
        %s153 = smul.addr %s150, 2
        %s154 = sadd.s32 %s152, %s153
        %s155 = smul.addr %s154, 8
        %s156 = scalar_lea.vmem %s0, %s155
        %s157 = smul.u32 2, %s18
      $region24: #{fourier_unit_forward.2} parent=19 // pred_fallthru
        _
    $region20: #{fourier_unit_forward.2} parent=5 // pred_fallthru
      _
    %p158 = scmp.le.s32.totalorder 1, %s10
    %p159 = scmp.lt.s32.totalorder %s10, 3
    %p160 = pnand %p158, %p159
    %p161 = pneg %p160
    // Predicated region
    $region25: #{fourier_unit_forward.2} parent=5 // pred_check
      _
    $region26: #{fourier_unit_forward.2} parent=5 // pred_check_branch
      %163 = sbr.rel (%p160) target = $region28
    $region27: #{fourier_unit_forward.2} parent=5 // pred_region
      %s164 = ssub.s32 %s10, 1
      %s165 = smul.u32 2, %s20
      %p166 = scmp.lt.s32.totalorder %s19, 1
      %s167 = scalar_select %p166, %s19, 1
      %p168 = scmp.lt.s32.totalorder %s165, 1
      %s169 = scalar_select %p168, %s165, 1
      %s170 = smul.addr %s167, 2
      %s171 = sadd.s32 %s169, %s170
      %s172 = smul.addr %s171, 8
      %s173 = scalar_lea.vmem %s0, %s172
      %p174 = pneg %p50
      %p175 = pneg %p47
      %p176 = pneg %p71
      %p177 = pneg %p68
      %p178 = pneg %p97
      %p179 = pneg %p94
      %p180 = scmp.lt.s32.totalorder %s19, 1
      %s181 = scalar_select %p180, %s19, 1
      %s182 = smul.addr %s181, 8
      %s183 = scalar_lea.vmem %s2, %s182
      %p184 = pneg %p123
      %p185 = pneg %p120
      %p186 = scmp.lt.s32.totalorder %s19, 1
      %s187 = scalar_select %p186, %s19, 1
      %s188 = smul.addr %s187, 8
      %s189 = scalar_lea.vmem %s3, %s188
      %s190 = smul.u32 2, %s20
      %p191 = scmp.lt.s32.totalorder %s19, 1
      %s192 = scalar_select %p191, %s19, 1
      %p193 = scmp.lt.s32.totalorder %s190, 1
      %s194 = scalar_select %p193, %s190, 1
      %s195 = smul.addr %s192, 2
      %s196 = sadd.s32 %s194, %s195
      %s197 = smul.addr %s196, 8
      %s198 = scalar_lea.vmem %s0, %s197
      %s199 = smul.u32 2, %s20
      %p200 = scmp.lt.s32.totalorder %s19, 1
      %s201 = scalar_select %p200, %s19, 1
      %s202 = smul.addr %s201, 8
      %s203 = scalar_lea.vmem %s2, %s202
      %p204 = scmp.lt.s32.totalorder %s19, 1
      %s205 = scalar_select %p204, %s19, 1
      %s206 = smul.addr %s205, 8
      %s207 = scalar_lea.vmem %s3, %s206
      %p208 = scmp.eq.s32.totalorder %s20, 0
      // Predicated region
      $region29: #{fourier_unit_forward.2} parent=27 // pred_check
        %p209 = pneg %p208
      $region30: #{fourier_unit_forward.2} parent=27 // pred_check_branch
        %211 = sbr.rel (%p209) target = $region32
      $region31: #{fourier_unit_forward.2} parent=27 // pred_region
        %vm212 = vcmask 7168
        %213 = vst.msk [vmem:[%s203] sm:$0xff] %vm212, 0.0
        %214 = vst.msk [vmem:[%s207] sm:$0xff] %vm212, 0.0
      $region32: #{fourier_unit_forward.2} parent=27 // pred_fallthru
        _
      %v215 = vld [vmem:[%s198] sm:$0xff]
      %v216 = vld [vmem:[%s198 + $0x8] sm:$0xff]
      %v217 = vld [vmem:[%s1] sm:$0xff]
      %vm218 = vcmask 64512
      %v220 = vsel %vm218, %v217, 0
      %222 = vmatprep.subr.mxu0 %v216
      %223 = vmatpush1.msra.mxu0 %v215
      %224 = vmatprep.subr.mxu0 0.0
      %225 = vmatpush1.msra.mxu0 0.0
      %226 = vmatprep.subr.mxu0 0.0
      %227 = vmatpush1.msra.mxu0 0.0
      %228 = vmatprep.subr.mxu0 0.0
      %229 = vmatpush1.msra.mxu0 0.0
      %230 = vmatprep.subr.mxu0 0.0
      %231 = vmatpush1.msra.mxu0 0.0
      %232 = vmatprep.subr.mxu0 0.0
      %233 = vmatpush1.msra.mxu0 0.0
      %234 = vmatprep.subr.mxu0 0.0
      %235 = vmatpush1.msra.mxu0 0.0
      %236 = vmatprep.subr.mxu0 0.0
      %237 = vmatpush1.msra.mxu0 0.0
      %238 = vmatprep.subr.mxu0 0.0
      %239 = vmatpush1.msra.mxu0 0.0
      %240 = vmatprep.subr.mxu0 0.0
      %241 = vmatpush1.msra.mxu0 0.0
      %242 = vmatprep.subr.mxu0 0.0
      %243 = vmatpush1.msra.mxu0 0.0
      %244 = vmatprep.subr.mxu0 0.0
      %245 = vmatpush1.msra.mxu0 0.0
      %246 = vmatprep.subr.mxu0 0.0
      %247 = vmatpush1.msra.mxu0 0.0
      %248 = vmatprep.subr.mxu0 0.0
      %249 = vmatpush1.msra.mxu0 0.0
      %250 = vmatprep.subr.mxu0 0.0
      %251 = vmatpush1.msra.mxu0 0.0
      %252 = vmatprep.subr.mxu0 0.0
      %253 = vmatpush1.msra.mxu0 0.0
      %254 = vmatprep.subr.mxu0 0.0
      %255 = vmatpush1.msra.mxu0 0.0
      %256 = vmatprep.subr.mxu0 0.0
      %257 = vmatpush1.msra.mxu0 0.0
      %258 = vmatprep.subr.mxu0 0.0
      %259 = vmatpush1.msra.mxu0 0.0
      %260 = vmatprep.subr.mxu0 0.0
      %261 = vmatpush1.msra.mxu0 0.0
      %262 = vmatprep.subr.mxu0 0.0
      %263 = vmatpush1.msra.mxu0 0.0
      %264 = vmatprep.subr.mxu0 0.0
      %265 = vmatpush1.msra.mxu0 0.0
      %266 = vmatprep.subr.mxu0 0.0
      %267 = vmatpush1.msra.mxu0 0.0
      %268 = vmatprep.subr.mxu0 0.0
      %269 = vmatpush1.msra.mxu0 0.0
      %270 = vmatprep.subr.mxu0 0.0
      %271 = vmatpush1.msra.mxu0 0.0
      %272 = vmatprep.subr.mxu0 0.0
      %273 = vmatpush1.msra.mxu0 0.0
      %274 = vmatprep.subr.mxu0 0.0
      %275 = vmatpush1.msra.mxu0 0.0
      %276 = vmatprep.subr.mxu0 0.0
      %277 = vmatpush1.msra.mxu0 0.0
      %278 = vmatprep.subr.mxu0 0.0
      %279 = vmatpush1.msra.mxu0 0.0
      %280 = vmatprep.subr.mxu0 0.0
      %281 = vmatpush1.msra.mxu0 0.0
      %282 = vmatprep.subr.mxu0 0.0
      %283 = vmatpush1.msra.mxu0 0.0
      %284 = vmatprep.subr.mxu0 0.0
      %285 = vmatpush1.msra.mxu0 0.0
      %286 = vmatprep.mubr.f32.mxu0 0.0
      %287 = vmatmul.mubr.f32.gmra.mrb[0].mxu0 %v220
      %v288 = vpop.f32.mrb[0].mxu0
      %v289 = vadd.f32 0.0, %v288
      %v290 = vpop.f32.mrb[0].mxu0
      %v291 = vadd.f32 0.0, %v290
      %292 = vdwg.mxu0
      %v293 = vlaneseq
      %v294 = vand.u32 %v293, 127
      %v295 = vadd.s32 %v294, 128
      %s296 = smul.u32 %s20, 144
      %s297 = ssub.s32 144, %s296
      %v298 = vstv %s297
      %vm299 = vcmp.lt.s32.totalorder %v294, %v298
      %vm300 = vcmp.lt.s32.totalorder %v295, %v298
      %v301 = vsel %vm299, %v289, 0.0
      %v302 = vsel %vm300, %v291, 0.0
      %v303 = vld [vmem:[%s203] sm:$0xff]
      %vm304 = vcmask 130048
      %v305 = vsel %vm304, %v302, 0.0
      %v306 = vadd.f32 %v301, %v305
      %307 = vadd.xlane.f32.xlu0 %v306
      %v308 = vpop.xlane.xlu0 %307
      %v309 = vadd.f32 %v303, %v308
      %vm310 = vcmask 7168
      %311 = vst.msk [vmem:[%s203] sm:$0xff] %vm310, %v309
      %v312 = vld [vmem:[%s207] sm:$0xff]
      %v313 = vmul.f32 %v301, %v301
      %v314 = vmul.f32 %v302, %v302
      %v315 = vsel %vm304, %v314, 0.0
      %v316 = vadd.f32 %v313, %v315
      %317 = vadd.xlane.f32.xlu0 %v316
      %v318 = vpop.xlane.xlu0 %317
      %v319 = vadd.f32 %v312, %v318
      %320 = vst.msk [vmem:[%s207] sm:$0xff] %vm310, %v319
      %p321 = scmp.lt.s32.totalorder %s19, 1
      %s322 = scalar_select %p321, %s19, 1
      %s323 = smul.addr %s322, 8
      %s324 = scalar_lea.vmem %s2, %s323
      %p325 = scmp.lt.s32.totalorder %s19, 1
      %s326 = scalar_select %p325, %s19, 1
      %s327 = smul.addr %s326, 8
      %s328 = scalar_lea.vmem %s3, %s327
      // Predicated region
      $region33: #{fourier_unit_forward.2} parent=27 // pred_check
        %p329 = pneg %p94
      $region34: #{fourier_unit_forward.2} parent=27 // pred_check_branch
        %331 = sbr.rel (%p329) target = $region36
      $region35: #{fourier_unit_forward.2} parent=27 // pred_region
        _
      $region36: #{fourier_unit_forward.2} parent=27 // pred_fallthru
        _
      // Predicated region
      $region37: #{fourier_unit_forward.2} parent=27 // pred_check
        %p332 = pneg %p120
      $region38: #{fourier_unit_forward.2} parent=27 // pred_check_branch
        %334 = sbr.rel (%p332) target = $region40
      $region39: #{fourier_unit_forward.2} parent=27 // pred_region
        _
      $region40: #{fourier_unit_forward.2} parent=27 // pred_fallthru
        _
    $region28: #{fourier_unit_forward.2} parent=5 // pred_fallthru
      _
    %p335 = scmp.le.s32.totalorder 2, %s10
    // Predicated region
    $region41: #{fourier_unit_forward.2} parent=5 // pred_check
      %p336 = pneg %p335
    $region42: #{fourier_unit_forward.2} parent=5 // pred_check_branch
      %338 = sbr.rel (%p336) target = $region44
    $region43: #{fourier_unit_forward.2} parent=5 // pred_region
      %s339 = ssub.s32 %s10, 2
      // Predicated region
      $region45: #{fourier_unit_forward.2} parent=43 // pred_check
        %p340 = pneg %p100
      $region46: #{fourier_unit_forward.2} parent=43 // pred_check_branch
        %342 = sbr.rel (%p340) target = $region48
      $region47: #{fourier_unit_forward.2} parent=43 // pred_region
        %p343 = scmp.lt.s32.totalorder %s21, 1
        %s344 = scalar_select %p343, %s21, 1
        %s345 = smul.addr %s344, 8
        %s346 = scalar_lea.vmem %s2, %s345
      $region48: #{fourier_unit_forward.2} parent=43 // pred_fallthru
        _
      // Predicated region
      $region49: #{fourier_unit_forward.2} parent=43 // pred_check
        %p347 = pneg %p126
      $region50: #{fourier_unit_forward.2} parent=43 // pred_check_branch
        %349 = sbr.rel (%p347) target = $region52
      $region51: #{fourier_unit_forward.2} parent=43 // pred_region
        %p350 = scmp.lt.s32.totalorder %s21, 1
        %s351 = scalar_select %p350, %s21, 1
        %s352 = smul.addr %s351, 8
        %s353 = scalar_lea.vmem %s3, %s352
      $region52: #{fourier_unit_forward.2} parent=43 // pred_fallthru
        _
    $region44: #{fourier_unit_forward.2} parent=5 // pred_fallthru
      _
  $region6: #{fourier_unit_forward.2} parent=0 // loop_footer
    %s14 = sadd.s32 1, %s10
  $region7: #{fourier_unit_forward.2} parent=0 // loop_footer_branch
    %9 = sbr.rel target = $region3
  $region8: #{fourier_unit_forward.2} parent=0 // loop_exit
    _

// kernel: reverse.1
$region0: #{reverse.1}
  %s0 = inlined_call_operand.vmem [shape: f32[2,4,16,7], index: 0, kind: input, shape index: {}]
  %s1 = inlined_call_operand.vmem [shape: f32[2,4,16,7], index: 1, kind: output, shape index: {}]
  $region1: #{reverse.1} parent=0
    #allocation0 [shape = 'u8[65536]{0}', space=vmem, size = 0x10000, scoped, tag = 'operand span for operand 0']
    #allocation1 [shape = 'u8[32768]{0}', space=vmem, size = 0x8000, scoped, tag = 'operand span for operand 1']
    %s2 = scalar_lea.vmem [#allocation0], 8
    // Predicated region
    $region2: #{reverse.1} parent=1 // pred_check
      _
    $region3: #{reverse.1} parent=1 // pred_check_branch
      %4 = sbr.rel (0) target = $region5
    $region4: #{reverse.1} parent=1 // pred_region
      // Predicated region
      $region6: #{reverse.1} parent=4 // pred_check
        _
      $region7: #{reverse.1} parent=4 // pred_check_branch
        %6 = sbr.rel (0) target = $region9
      $region8: #{reverse.1} parent=4 // pred_region
        // Predicated region
        $region21: #{reverse.1} parent=8 // pred_check
          _
        $region22: #{reverse.1} parent=8 // pred_check_branch
          %35 = sbr.rel (0) target = $region24
        $region23: #{reverse.1} parent=8 // pred_region
          loop: start=0, step=1, limit=1
          $region25: #{reverse.1} parent=23 // loop_pre_header
            _
          $region26: #{reverse.1} parent=23 // loop_header
            %s37 = sphi 0, %s41
            %p38 = scmp.ge.s32.totalorder %s37, 1
            %s42 = sphi %s0, %s0
            %s43 = sphi %s2, %s2
          $region27: #{reverse.1} parent=23 // loop_header_branch
            %40 = sbr.rel (%p38) target = $region31
          $region28: #{reverse.1} parent=23 // loop_body
            %v44 = vld [vmem:[%s42] sm:$0xff]
            %45 = vst [vmem:[%s43] sm:$0xff] %v44
            %v46 = vld [vmem:[%s42 + $0x8] sm:$0xff]
            %47 = vst [vmem:[%s43 + $0x10] sm:$0xff] %v46
            %v48 = vld [vmem:[%s42 + $0x10] sm:$0xff]
            %49 = vst [vmem:[%s43 + $0x20] sm:$0xff] %v48
            %v50 = vld [vmem:[%s42 + $0x18] sm:$0xff]
            %51 = vst [vmem:[%s43 + $0x30] sm:$0xff] %v50
            %v52 = vld [vmem:[%s42 + $0x20] sm:$0xff]
            %53 = vst [vmem:[%s43 + $0x40] sm:$0xff] %v52
            %v54 = vld [vmem:[%s42 + $0x28] sm:$0xff]
            %55 = vst [vmem:[%s43 + $0x50] sm:$0xff] %v54
            %v56 = vld [vmem:[%s42 + $0x30] sm:$0xff]
            %57 = vst [vmem:[%s43 + $0x60] sm:$0xff] %v56
            %v58 = vld [vmem:[%s42 + $0x38] sm:$0xff]
            %59 = vst [vmem:[%s43 + $0x70] sm:$0xff] %v58
          $region29: #{reverse.1} parent=23 // loop_footer
            %s41 = sadd.s32 1, %s37
          $region30: #{reverse.1} parent=23 // loop_footer_branch
            %36 = sbr.rel target = $region26
          $region31: #{reverse.1} parent=23 // loop_exit
            _
        $region24: #{reverse.1} parent=8 // pred_fallthru
          _
        // Predicated region
        $region32: #{reverse.1} parent=8 // pred_check
          _
        $region33: #{reverse.1} parent=8 // pred_check_branch
          %61 = sbr.rel target = $region35
        $region34: #{reverse.1} parent=8 // pred_region
          _
        $region35: #{reverse.1} parent=8 // pred_fallthru
          _
      $region9: #{reverse.1} parent=4 // pred_fallthru
        _
      // Predicated region
      $region10: #{reverse.1} parent=4 // pred_check
        _
      $region11: #{reverse.1} parent=4 // pred_check_branch
        %8 = sbr.rel target = $region13
      $region12: #{reverse.1} parent=4 // pred_region
        loop: start=0, step=1, limit=1
        $region14: #{reverse.1} parent=12 // loop_pre_header
          _
        $region15: #{reverse.1} parent=12 // loop_header
          %s11 = sphi 0, %s15
          %p12 = scmp.ge.s32.totalorder %s11, 1
          %s16 = sphi %s0, %s0
          %s17 = sphi %s2, %s2
        $region16: #{reverse.1} parent=12 // loop_header_branch
          %14 = sbr.rel (%p12) target = $region20
        $region17: #{reverse.1} parent=12 // loop_body
          %v18 = vld [vmem:[%s16] sm:$0xff]
          %19 = vst [vmem:[%s17] sm:$0xff] %v18
          %v20 = vld [vmem:[%s16 + $0x8] sm:$0xff]
          %21 = vst [vmem:[%s17 + $0x10] sm:$0xff] %v20
          %v22 = vld [vmem:[%s16 + $0x10] sm:$0xff]
          %23 = vst [vmem:[%s17 + $0x20] sm:$0xff] %v22
          %v24 = vld [vmem:[%s16 + $0x18] sm:$0xff]
          %25 = vst [vmem:[%s17 + $0x30] sm:$0xff] %v24
          %v26 = vld [vmem:[%s16 + $0x20] sm:$0xff]
          %27 = vst [vmem:[%s17 + $0x40] sm:$0xff] %v26
          %v28 = vld [vmem:[%s16 + $0x28] sm:$0xff]
          %29 = vst [vmem:[%s17 + $0x50] sm:$0xff] %v28
          %v30 = vld [vmem:[%s16 + $0x30] sm:$0xff]
          %31 = vst [vmem:[%s17 + $0x60] sm:$0xff] %v30
          %v32 = vld [vmem:[%s16 + $0x38] sm:$0xff]
          %33 = vst [vmem:[%s17 + $0x70] sm:$0xff] %v32
        $region18: #{reverse.1} parent=12 // loop_footer
          %s15 = sadd.s32 1, %s11
        $region19: #{reverse.1} parent=12 // loop_footer_branch
          %10 = sbr.rel target = $region15
        $region20: #{reverse.1} parent=12 // loop_exit
          _
      $region13: #{reverse.1} parent=4 // pred_fallthru
        _
    $region5: #{reverse.1} parent=1 // pred_fallthru
      _
    %62 = vnop
    %s63 = scalar_lea.vmem [#allocation0], 7
    %v64 = vld [vmem:[%s63] ss:$-1 sm:$0xff]
    %v65 = vrot.slane %v64, 1
    %66 = vst [vmem:[#allocation1] sm:$0xff] %v65
    %s67 = scalar_lea.vmem [#allocation0], 8
    %s68 = scalar_lea.vmem %s67, 7 [#allocation0]
    %v69 = vld [vmem:[%s68] ss:$-1 sm:$0xff]
    %v70 = vrot.slane %v69, 1
    %v71 = vlaneseq
    %v72 = vshrl.u32 %v71, 7
    %vm73 = vcmp.lt.s32.totalorder %v72, 7
    %74 = vst.msk [vmem:[#allocation1] sm:$0xff] %vm73, %v70
    %s75 = scalar_lea.vmem [#allocation1], 8
    %s76 = scalar_lea.vmem [#allocation0], 16
    %s77 = scalar_lea.vmem %s76, 7 [#allocation0]
    %v78 = vld [vmem:[%s77] ss:$-1 sm:$0xff]
    %v79 = vrot.slane %v78, 1
    %80 = vst [vmem:[%s75] sm:$0xff] %v79
    %s81 = scalar_lea.vmem %s76, 8 [#allocation0]
    %s82 = scalar_lea.vmem %s81, 7 [#allocation0]
    %v83 = vld [vmem:[%s82] ss:$-1 sm:$0xff]
    %v84 = vrot.slane %v83, 1
    %v85 = vlaneseq
    %v86 = vshrl.u32 %v85, 7
    %vm87 = vcmp.lt.s32.totalorder %v86, 7
    %88 = vst.msk [vmem:[%s75] sm:$0xff] %vm87, %v84
    %s89 = scalar_lea.vmem [#allocation1], 16
    %s90 = scalar_lea.vmem [#allocation0], 32
    %s91 = scalar_lea.vmem %s90, 7 [#allocation0]
    %v92 = vld [vmem:[%s91] ss:$-1 sm:$0xff]
    %v93 = vrot.slane %v92, 1
    %94 = vst [vmem:[%s89] sm:$0xff] %v93
    %s95 = scalar_lea.vmem %s90, 8 [#allocation0]
    %s96 = scalar_lea.vmem %s95, 7 [#allocation0]
    %v97 = vld [vmem:[%s96] ss:$-1 sm:$0xff]
    %v98 = vrot.slane %v97, 1
    %v99 = vlaneseq
    %v100 = vshrl.u32 %v99, 7
    %vm101 = vcmp.lt.s32.totalorder %v100, 7
    %102 = vst.msk [vmem:[%s89] sm:$0xff] %vm101, %v98
    %s103 = scalar_lea.vmem [#allocation1], 24
    %s104 = scalar_lea.vmem [#allocation0], 48
    %s105 = scalar_lea.vmem %s104, 7 [#allocation0]
    %v106 = vld [vmem:[%s105] ss:$-1 sm:$0xff]
    %v107 = vrot.slane %v106, 1
    %108 = vst [vmem:[%s103] sm:$0xff] %v107
    %s109 = scalar_lea.vmem %s104, 8 [#allocation0]
    %s110 = scalar_lea.vmem %s109, 7 [#allocation0]
    %v111 = vld [vmem:[%s110] ss:$-1 sm:$0xff]
    %v112 = vrot.slane %v111, 1
    %v113 = vlaneseq
    %v114 = vshrl.u32 %v113, 7
    %vm115 = vcmp.lt.s32.totalorder %v114, 7
    %116 = vst.msk [vmem:[%s103] sm:$0xff] %vm115, %v112
    %s117 = scalar_lea.vmem [#allocation1], 32
    %s118 = scalar_lea.vmem [#allocation0], 64
    %s119 = scalar_lea.vmem %s118, 7 [#allocation0]
    %v120 = vld [vmem:[%s119] ss:$-1 sm:$0xff]
    %v121 = vrot.slane %v120, 1
    %122 = vst [vmem:[%s117] sm:$0xff] %v121
    %s123 = scalar_lea.vmem %s118, 8 [#allocation0]
    %s124 = scalar_lea.vmem %s123, 7 [#allocation0]
    %v125 = vld [vmem:[%s124] ss:$-1 sm:$0xff]
    %v126 = vrot.slane %v125, 1
    %v127 = vlaneseq
    %v128 = vshrl.u32 %v127, 7
    %vm129 = vcmp.lt.s32.totalorder %v128, 7
    %130 = vst.msk [vmem:[%s117] sm:$0xff] %vm129, %v126
    %s131 = scalar_lea.vmem [#allocation1], 40
    %s132 = scalar_lea.vmem [#allocation0], 80
    %s133 = scalar_lea.vmem %s132, 7 [#allocation0]
    %v134 = vld [vmem:[%s133] ss:$-1 sm:$0xff]
    %v135 = vrot.slane %v134, 1
    %136 = vst [vmem:[%s131] sm:$0xff] %v135
    %s137 = scalar_lea.vmem %s132, 8 [#allocation0]
    %s138 = scalar_lea.vmem %s137, 7 [#allocation0]
    %v139 = vld [vmem:[%s138] ss:$-1 sm:$0xff]
    %v140 = vrot.slane %v139, 1
    %v141 = vlaneseq
    %v142 = vshrl.u32 %v141, 7
    %vm143 = vcmp.lt.s32.totalorder %v142, 7
    %144 = vst.msk [vmem:[%s131] sm:$0xff] %vm143, %v140
    %s145 = scalar_lea.vmem [#allocation1], 48
    %s146 = scalar_lea.vmem [#allocation0], 96
    %s147 = scalar_lea.vmem %s146, 7 [#allocation0]
    %v148 = vld [vmem:[%s147] ss:$-1 sm:$0xff]
    %v149 = vrot.slane %v148, 1
    %150 = vst [vmem:[%s145] sm:$0xff] %v149
    %s151 = scalar_lea.vmem %s146, 8 [#allocation0]
    %s152 = scalar_lea.vmem %s151, 7 [#allocation0]
    %v153 = vld [vmem:[%s152] ss:$-1 sm:$0xff]
    %v154 = vrot.slane %v153, 1
    %v155 = vlaneseq
    %v156 = vshrl.u32 %v155, 7
    %vm157 = vcmp.lt.s32.totalorder %v156, 7
    %158 = vst.msk [vmem:[%s145] sm:$0xff] %vm157, %v154
    %s159 = scalar_lea.vmem [#allocation1], 56
    %s160 = scalar_lea.vmem [#allocation0], 112
    %s161 = scalar_lea.vmem %s160, 7 [#allocation0]
    %v162 = vld [vmem:[%s161] ss:$-1 sm:$0xff]
    %v163 = vrot.slane %v162, 1
    %164 = vst [vmem:[%s159] sm:$0xff] %v163
    %s165 = scalar_lea.vmem %s160, 8 [#allocation0]
    %s166 = scalar_lea.vmem %s165, 7 [#allocation0]
    %v167 = vld [vmem:[%s166] ss:$-1 sm:$0xff]
    %v168 = vrot.slane %v167, 1
    %v169 = vlaneseq
    %v170 = vshrl.u32 %v169, 7
    %vm171 = vcmp.lt.s32.totalorder %v170, 7
    %172 = vst.msk [vmem:[%s159] sm:$0xff] %vm171, %v168
    // Predicated region
    $region36: #{reverse.1} parent=1 // pred_check
      _
    $region37: #{reverse.1} parent=1 // pred_check_branch
      %174 = sbr.rel (0) target = $region39
    $region38: #{reverse.1} parent=1 // pred_region
      // Predicated region
      $region40: #{reverse.1} parent=38 // pred_check
        _
      $region41: #{reverse.1} parent=38 // pred_check_branch
        %176 = sbr.rel (0) target = $region43
      $region42: #{reverse.1} parent=38 // pred_region
        // Predicated region
        $region55: #{reverse.1} parent=42 // pred_check
          _
        $region56: #{reverse.1} parent=42 // pred_check_branch
          %205 = sbr.rel (0) target = $region58
        $region57: #{reverse.1} parent=42 // pred_region
          loop: start=0, step=1, limit=1
          $region59: #{reverse.1} parent=57 // loop_pre_header
            _
          $region60: #{reverse.1} parent=57 // loop_header
            %s207 = sphi 0, %s211
            %p208 = scmp.ge.s32.totalorder %s207, 1
            %s212 = sphi [#allocation1], [#allocation1]
            %s213 = sphi %s1, %s1
          $region61: #{reverse.1} parent=57 // loop_header_branch
            %210 = sbr.rel (%p208) target = $region65
          $region62: #{reverse.1} parent=57 // loop_body
            %v214 = vld [vmem:[%s212] sm:$0xff]
            %215 = vst [vmem:[%s213] sm:$0xff] %v214
            %v216 = vld [vmem:[%s212 + $0x8] sm:$0xff]
            %217 = vst [vmem:[%s213 + $0x8] sm:$0xff] %v216
            %v218 = vld [vmem:[%s212 + $0x10] sm:$0xff]
            %219 = vst [vmem:[%s213 + $0x10] sm:$0xff] %v218
            %v220 = vld [vmem:[%s212 + $0x18] sm:$0xff]
            %221 = vst [vmem:[%s213 + $0x18] sm:$0xff] %v220
            %v222 = vld [vmem:[%s212 + $0x20] sm:$0xff]
            %223 = vst [vmem:[%s213 + $0x20] sm:$0xff] %v222
            %v224 = vld [vmem:[%s212 + $0x28] sm:$0xff]
            %225 = vst [vmem:[%s213 + $0x28] sm:$0xff] %v224
            %v226 = vld [vmem:[%s212 + $0x30] sm:$0xff]
            %227 = vst [vmem:[%s213 + $0x30] sm:$0xff] %v226
            %v228 = vld [vmem:[%s212 + $0x38] sm:$0xff]
            %229 = vst [vmem:[%s213 + $0x38] sm:$0xff] %v228
          $region63: #{reverse.1} parent=57 // loop_footer
            %s211 = sadd.s32 1, %s207
          $region64: #{reverse.1} parent=57 // loop_footer_branch
            %206 = sbr.rel target = $region60
          $region65: #{reverse.1} parent=57 // loop_exit
            _
        $region58: #{reverse.1} parent=42 // pred_fallthru
          _
        // Predicated region
        $region66: #{reverse.1} parent=42 // pred_check
          _
        $region67: #{reverse.1} parent=42 // pred_check_branch
          %231 = sbr.rel target = $region69
        $region68: #{reverse.1} parent=42 // pred_region
          _
        $region69: #{reverse.1} parent=42 // pred_fallthru
          _
      $region43: #{reverse.1} parent=38 // pred_fallthru
        _
      // Predicated region
      $region44: #{reverse.1} parent=38 // pred_check
        _
      $region45: #{reverse.1} parent=38 // pred_check_branch
        %178 = sbr.rel target = $region47
      $region46: #{reverse.1} parent=38 // pred_region
        loop: start=0, step=1, limit=1
        $region48: #{reverse.1} parent=46 // loop_pre_header
          _
        $region49: #{reverse.1} parent=46 // loop_header
          %s181 = sphi 0, %s185
          %p182 = scmp.ge.s32.totalorder %s181, 1
          %s186 = sphi [#allocation1], [#allocation1]
          %s187 = sphi %s1, %s1
        $region50: #{reverse.1} parent=46 // loop_header_branch
          %184 = sbr.rel (%p182) target = $region54
        $region51: #{reverse.1} parent=46 // loop_body
          %v188 = vld [vmem:[%s186] sm:$0xff]
          %189 = vst [vmem:[%s187] sm:$0xff] %v188
          %v190 = vld [vmem:[%s186 + $0x8] sm:$0xff]
          %191 = vst [vmem:[%s187 + $0x8] sm:$0xff] %v190
          %v192 = vld [vmem:[%s186 + $0x10] sm:$0xff]
          %193 = vst [vmem:[%s187 + $0x10] sm:$0xff] %v192
          %v194 = vld [vmem:[%s186 + $0x18] sm:$0xff]
          %195 = vst [vmem:[%s187 + $0x18] sm:$0xff] %v194
          %v196 = vld [vmem:[%s186 + $0x20] sm:$0xff]
          %197 = vst [vmem:[%s187 + $0x20] sm:$0xff] %v196
          %v198 = vld [vmem:[%s186 + $0x28] sm:$0xff]
          %199 = vst [vmem:[%s187 + $0x28] sm:$0xff] %v198
          %v200 = vld [vmem:[%s186 + $0x30] sm:$0xff]
          %201 = vst [vmem:[%s187 + $0x30] sm:$0xff] %v200
          %v202 = vld [vmem:[%s186 + $0x38] sm:$0xff]
          %203 = vst [vmem:[%s187 + $0x38] sm:$0xff] %v202
        $region52: #{reverse.1} parent=46 // loop_footer
          %s185 = sadd.s32 1, %s181
        $region53: #{reverse.1} parent=46 // loop_footer_branch
          %180 = sbr.rel target = $region49
        $region54: #{reverse.1} parent=46 // loop_exit
          _
      $region47: #{reverse.1} parent=38 // pred_fallthru
        _
    $region39: #{reverse.1} parent=1 // pred_fallthru
      _
    %232 = vnop

</llo_original>
